<compile_context>
chip_gen: v6e
topology: v6e:2x2x1
jax: 0.10.0
libtpu: 0.0.40
codegen_flags: <defaults>
</compile_context>

<pallas_src>
import jax
import jax.numpy as jnp
from jax.experimental import pallas as pl
from jax.experimental.pallas import tpu as pltpu


_TL_CAP = 4096      # lane-tile cap: HBM-bound roofline plateaus well below this
_TK_CAP = 1024      # contraction (Cin) tile cap


# ------------------------- budgets / tiling helpers -------------------------

def _tpu_vmem_bytes():
    try:
        return int(pltpu.get_tpu_info().vmem_capacity_bytes)
    except Exception:
        return 64 * 1024 * 1024         # conservative (v7x per-TensorCore)


def _budgets():
    vmem = _tpu_vmem_bytes()
    vmem_limit = min(vmem * 3 // 4, 96 * 1024 * 1024)   # leave compiler headroom
    stream_budget = min(vmem // 4, 16 * 1024 * 1024)    # streamed-tile budget
    return int(vmem_limit), int(stream_budget)


def _sublane(dtype):
    return {4: 8, 2: 16, 1: 32}.get(jnp.dtype(dtype).itemsize, 8)


def _pick_tk(cin):
    """Contraction tile: full Cin when small, else a 128-multiple that divides
    Cin exactly (padding garbage into a reduction would corrupt results)."""
    if cin <= _TK_CAP:
        return int(cin)
    for tk in (1024, 512, 256, 128):
        if cin % tk == 0:
            return tk
    return int(cin)


def _pick_tl(L, per_lane_bytes, fixed_bytes, budget, batch):
    """Lane tile along L: largest 128-multiple that (a) fits the honest VMEM
    budget, (b) stays under the roofline-plateau cap, (c) does not exceed L
    rounded down to 128, and (d) leaves >= 2 parallel grid steps when B==1."""
    if L < 128:                      # callers fall back to XLA before this
        return int(L)
    l_floor = (L // 128) * 128
    avail = max(budget - fixed_bytes, per_lane_bytes * 128)
    tl = (avail // per_lane_bytes) // 128 * 128
    tl = int(max(128, min(tl, _TL_CAP, l_floor)))
    if batch == 1 and l_floor >= 256 and pl.cdiv(L, tl) < 2:
        tl = int(max(128, ((l_floor // 2) // 128) * 128))
    return tl


# ------------------------- Pallas kernels -------------------------

def _conv1x1_kernel(w_ref, b_ref, x_ref, o_ref, acc_ref):
    # w:(Cout,tk)  b:(Cout,1)  x:(1,tk,tl)  o:(1,Cout,tl)  acc:(Cout,tl) f32
    k = pl.program_id(2)

    @pl.when(k == 0)
    def _():
        acc_ref[...] = jnp.zeros_like(acc_ref)

    acc_ref[...] += jnp.dot(w_ref[...], x_ref[0],
                            preferred_element_type=jnp.float32)

    @pl.when(k == pl.num_programs(2) - 1)
    def _():
        o_ref[0] = (acc_ref[...] + b_ref[...]).astype(o_ref.dtype)


def _conv1x1_sum_kernel(w_ref, b_ref, x_ref, xout_ref, o_ref, acc_ref):
    k = pl.program_id(2)

    @pl.when(k == 0)
    def _():
        acc_ref[...] = jnp.zeros_like(acc_ref)

    acc_ref[...] += jnp.dot(w_ref[...], x_ref[0],
                            preferred_element_type=jnp.float32)

    @pl.when(k == pl.num_programs(2) - 1)
    def _():
        y = (acc_ref[...] + b_ref[...]).astype(o_ref.dtype)
        # skip connection added in the output dtype (no f32 upcast of x_out)
        o_ref[0] = y + xout_ref[0].astype(o_ref.dtype)


def _conv1x1_concat_kernel(w_ref, b_ref, x_ref, xout_ref, o_ref, acc_ref):
    # conv(x_in) and x_out written into disjoint, sublane-aligned channel
    # slices of the final output -> no separate XLA concatenate pass.
    k = pl.program_id(2)
    cout = acc_ref.shape[0]

    @pl.when(k == 0)
    def _():
        acc_ref[...] = jnp.zeros_like(acc_ref)

    acc_ref[...] += jnp.dot(w_ref[...], x_ref[0],
                            preferred_element_type=jnp.float32)

    @pl.when(k == pl.num_programs(2) - 1)
    def _():
        o_ref[0, :cout, :] = (acc_ref[...] + b_ref[...]).astype(o_ref.dtype)
        o_ref[0, cout:, :] = xout_ref[0].astype(o_ref.dtype)


def _add_kernel(a_ref, b_ref, o_ref):
    o_ref[...] = a_ref[...] + b_ref[...]


# ------------------------- wrappers -------------------------

def _conv1x1(x_in, weight, bias, x_out=None, fuse="none"):
    """fuse: 'none' -> conv only; 'sum' -> conv+x_out; 'concat' -> [conv, x_out]."""
    B, Cin, L = x_in.shape
    Cout = weight.shape[0]
    out_dtype = x_in.dtype
    isz = jnp.dtype(out_dtype).itemsize

    # weight in activation dtype (native bf16 MXU path, half the weight DMA),
    # bias kept f32 (added to the f32 accumulator).
    w2 = weight[:, :, 0].astype(out_dtype)           # (Cout, Cin)
    b2 = bias.reshape(Cout, 1).astype(jnp.float32)   # (Cout, 1)

    tk = _pick_tk(Cin)
    n_k = pl.cdiv(Cin, tk)

    cskip = 0 if x_out is None else x_out.shape[1]
    ctot = Cout + cskip if fuse == "concat" else Cout

    vmem_limit, budget = _budgets()
    # honest per-lane-column bytes: double-buffered streamed blocks + f32
    # accumulator + slack for the f32 dot intermediate.
    per_lane = (2 * tk * isz          # x_in block (x2 pipeline buffers)
                + 2 * cskip * isz     # x_out block
                + 2 * ctot * isz      # output block
                + 2 * Cout * 4)       # f32 accumulator + dot temps
    fixed = 2 * Cout * tk * isz + 2 * Cout * 4       # weight + bias (x2 buffers)
    tl = _pick_tl(L, per_lane, fixed, budget, B)
    n_l = pl.cdiv(L, tl)

    in_specs = [
        pl.BlockSpec((Cout, tk), lambda b, l, k: (0, k)),
        pl.BlockSpec((Cout, 1), lambda b, l, k: (0, 0)),
        pl.BlockSpec((1, tk, tl), lambda b, l, k: (b, k, l)),
    ]
    operands = [w2, b2, x_in]
    if fuse in ("sum", "concat"):
        in_specs.append(pl.BlockSpec((1, cskip, tl), lambda b, l, k: (b, 0, l)))
        operands.append(x_out)

    kernel = {"none": _conv1x1_kernel,
              "sum": _conv1x1_sum_kernel,
              "concat": _conv1x1_concat_kernel}[fuse]

    return pl.pallas_call(
        kernel,
        out_shape=jax.ShapeDtypeStruct((B, ctot, L), out_dtype),
        grid_spec=pltpu.PrefetchScalarGridSpec(
            num_scalar_prefetch=0,
            grid=(B, n_l, n_k),
            in_specs=in_specs,
            out_specs=pl.BlockSpec((1, ctot, tl), lambda b, l, k: (b, 0, l)),
            scratch_shapes=[pltpu.VMEM((Cout, tl), jnp.float32)],
        ),
        compiler_params=pltpu.CompilerParams(
            dimension_semantics=("parallel", "parallel", "arbitrary"),
            vmem_limit_bytes=vmem_limit),
    )(*operands)


def _elementwise_sum(a, b):
    # Flatten (B, C, L) -> (B*C, L): fills sublanes when C < 8 and gives a
    # longer, more splittable 2D grid (v7x megacore).
    B, C, L = a.shape
    out_dtype = a.dtype
    isz = jnp.dtype(out_dtype).itemsize
    R = B * C
    a2 = a.reshape(R, L)
    b2 = b.reshape(R, L)

    tr = R if R <= 512 else 512                      # 512 % 8 == 0
    n_r = pl.cdiv(R, tr)

    vmem_limit, budget = _budgets()
    per_lane = 6 * tr * isz                          # 3 arrays, double-buffered
    tl = _pick_tl(L, per_lane, 0, budget, n_r)
    n_l = pl.cdiv(L, tl)

    out = pl.pallas_call(
        _add_kernel,
        out_shape=jax.ShapeDtypeStruct((R, L), out_dtype),
        grid_spec=pltpu.PrefetchScalarGridSpec(
            num_scalar_prefetch=0,
            grid=(n_r, n_l),
            in_specs=[pl.BlockSpec((tr, tl), lambda r, l: (r, l)),
                      pl.BlockSpec((tr, tl), lambda r, l: (r, l))],
            out_specs=pl.BlockSpec((tr, tl), lambda r, l: (r, l)),
        ),
        compiler_params=pltpu.CompilerParams(
            dimension_semantics=("parallel", "parallel"),
            vmem_limit_bytes=vmem_limit),
    )(a2, b2)
    return out.reshape(B, C, L)


class Aggregator1d:
    """JAX/Pallas port of dlkit Aggregator1d (kernel_size=1 path)."""

    def __init__(self, in_channels, out_channels, kernel_size=1,
                 aggregator="sum", key=None):
        assert aggregator in ("sum", "concat")
        self.in_channels = in_channels
        self.out_channels = out_channels
        self.aggregator = aggregator
        self.has_conv = in_channels != out_channels
        # TODO(synk): kernel_size > 1 Conv1d (shifted-matmul accumulation) not
        # implemented in the Pallas path; the module default is kernel_size=1.
        assert kernel_size == 1, "only kernel_size=1 supported in Pallas path"

        if self.has_conv:
            key = jax.random.PRNGKey(42) if key is None else key
            kw, kb = jax.random.split(key)
            # mimic PyTorch Conv1d default init: U(-bound, bound),
            # bound = 1/sqrt(in_channels * kernel_size)
            bound = 1.0 / (in_channels * kernel_size) ** 0.5
            self.weight = jax.random.uniform(
                kw, (out_channels, in_channels, kernel_size),
                minval=-bound, maxval=bound, dtype=jnp.float32)
            self.bias = jax.random.uniform(
                kb, (out_channels,), minval=-bound, maxval=bound,
                dtype=jnp.float32)
        else:
            self.weight = None
            self.bias = None

    def _xla_conv(self, x_in):
        w = self.weight[:, :, 0]
        y = jnp.einsum("oc,bcl->bol", w, x_in.astype(w.dtype))
        return (y + self.bias[None, :, None]).astype(x_in.dtype)

    def __call__(self, x_in, x_out):
        L = x_in.shape[-1]
        if self.has_conv:
            if L < 128:
                # Tiny lane dim: every store would be a masked partial vst;
                # XLA's fused einsum+add is already at roofline here.
                y = self._xla_conv(x_in)
                if self.aggregator == "sum":
                    return y + x_out
                return jnp.concatenate([y, x_out], axis=1)
            if self.aggregator == "sum":
                return _conv1x1(x_in, self.weight, self.bias, x_out, fuse="sum")
            # concat: fuse only when the channel split point is sublane-aligned
            # (unmasked full-tile stores); otherwise conv in Pallas, cat in XLA.
            if self.out_channels % _sublane(x_in.dtype) == 0:
                return _conv1x1(x_in, self.weight, self.bias, x_out,
                                fuse="concat")
            y = _conv1x1(x_in, self.weight, self.bias, fuse="none")
            return jnp.concatenate([y, x_out], axis=1)
        else:
            if self.aggregator == "sum":
                if L < 128:
                    return x_in + x_out
                return _elementwise_sum(x_in, x_out)
            # Pure layout op, no compute to fuse: a Pallas copy kernel would
            # move the same HBM bytes as XLA's concatenate.
            return jnp.concatenate([x_in, x_out], axis=1)


# ------------------------- demo / self-check -------------------------

if __name__ == "__main__":
    key = jax.random.PRNGKey(0)
    k1, k2, k3, k4, k5 = jax.random.split(key, 5)

    B, Cin, Cout, L = 2, 4, 8, 256
    x_in = jax.random.normal(k1, (B, Cin, L), dtype=jnp.float32)
    x_out = jax.random.normal(k2, (B, Cout, L), dtype=jnp.float32)

    # --- conv (Cin != Cout) + 'sum' aggregator ---
    agg_sum_m = Aggregator1d(Cin, Cout, kernel_size=1, aggregator="sum", key=k3)
    res_sum = jax.block_until_ready(agg_sum_m(x_in, x_out))
    ref_sum = (jnp.einsum("oc,bcl->bol", agg_sum_m.weight[:, :, 0], x_in)
               + agg_sum_m.bias[None, :, None] + x_out)
    assert res_sum.shape == (B, Cout, L)
    assert jnp.allclose(res_sum, ref_sum, atol=1e-5, rtol=1e-5)

    # --- conv (Cin != Cout) + 'concat' aggregator (sublane-aligned, fused) ---
    agg_cat_m = Aggregator1d(Cin, Cout, kernel_size=1, aggregator="concat", key=k3)
    res_cat = jax.block_until_ready(agg_cat_m(x_in, x_out))
    ref_cat = jnp.concatenate(
        [jnp.einsum("oc,bcl->bol", agg_cat_m.weight[:, :, 0], x_in)
         + agg_cat_m.bias[None, :, None],
         x_out], axis=1)
    assert res_cat.shape == (B, 2 * Cout, L)
    assert jnp.allclose(res_cat, ref_cat, atol=1e-5, rtol=1e-5)

    # --- identity (Cin == Cout) + 'sum' aggregator ---
    x_in2 = jax.random.normal(k4, (B, Cout, L), dtype=jnp.float32)
    agg_id = Aggregator1d(Cout, Cout, kernel_size=1, aggregator="sum")
    res_id = jax.block_until_ready(agg_id(x_in2, x_out))
    assert jnp.allclose(res_id, x_in2 + x_out, atol=1e-6)

    # --- boundary masking: L not a multiple of the lane tile ---
    Lb = 200
    x_inb = jax.random.normal(k5, (B, Cin, Lb), dtype=jnp.float32)
    x_outb = jax.random.normal(k2, (B, Cout, Lb), dtype=jnp.float32)
    res_b = jax.block_until_ready(agg_sum_m(x_inb, x_outb))
    ref_b = (jnp.einsum("oc,bcl->bol", agg_sum_m.weight[:, :, 0], x_inb)
             + agg_sum_m.bias[None, :, None] + x_outb)
    assert jnp.allclose(res_b, ref_b, atol=1e-5, rtol=1e-5)

    print("KERNEL_OK")
</pallas_src>

<mosaic_0001>
module attributes {stable_mosaic.version = 11 : i64} {
  func.func @_conv1x1_sum_kernel(%arg0: i32, %arg1: i32, %arg2: i32, %arg3: memref<8x4xf32, #tpu.memory_space<vmem>>, %arg4: memref<8x1xf32, #tpu.memory_space<vmem>>, %arg5: memref<1x4x256xf32, #tpu.memory_space<vmem>>, %arg6: memref<1x8x256xf32, #tpu.memory_space<vmem>>, %arg7: memref<1x8x256xf32, #tpu.memory_space<vmem>>, %arg8: memref<8x256xf32, #tpu.memory_space<vmem>>) attributes {dimension_semantics = [#tpu.dimension_semantics<parallel>, #tpu.dimension_semantics<parallel>, #tpu.dimension_semantics<arbitrary>], iteration_bounds = array<i64: 2, 1, 1>, scalar_prefetch = 0 : i64, scratch_operands = 1 : i64, tpu.core_type = #tpu.core_type<tc>, window_params = [{transform_indices = @transform_0, window_bounds = array<i64: 8, 4>}, {pipeline_mode = #tpu.pipeline_mode<synchronous>, transform_indices = @transform_1, window_bounds = array<i64: 8, 1>}, {transform_indices = @transform_2, window_bounds = array<i64: 1, 4, 256>}, {transform_indices = @transform_3, window_bounds = array<i64: 1, 8, 256>}, {transform_indices = @transform_4, window_bounds = array<i64: 1, 8, 256>}]} {
    %c0_i32 = arith.constant 0 : i32
    %0 = arith.cmpi eq, %arg2, %c0_i32 : i32
    %1 = arith.extui %0 : i1 to i32
    %c0_i32_0 = arith.constant 0 : i32
    %2 = arith.cmpi ne, %1, %c0_i32_0 : i32
    scf.if %2 {
      %cst_11 = arith.constant 0.000000e+00 : f32
      %13 = vector.broadcast %cst_11 : f32 to vector<8x256xf32>
      %c0_12 = arith.constant 0 : index
      %c0_13 = arith.constant 0 : index
      %14 = vector.load %arg8[%c0_12, %c0_13] : memref<8x256xf32, #tpu.memory_space<vmem>>, vector<8x256xf32>
      tpu.vector_store %arg8[%c0_12, %c0_13], %13 {strides = array<i32>} : memref<8x256xf32, #tpu.memory_space<vmem>>, vector<8x256xf32>,
    } else {
    }
    %c0 = arith.constant 0 : index
    %c0_1 = arith.constant 0 : index
    %3 = vector.load %arg8[%c0, %c0_1] : memref<8x256xf32, #tpu.memory_space<vmem>>, vector<8x256xf32>
    %c0_2 = arith.constant 0 : index
    %c0_3 = arith.constant 0 : index
    %4 = vector.load %arg3[%c0_2, %c0_3] : memref<8x4xf32, #tpu.memory_space<vmem>>, vector<8x4xf32>
    %c0_4 = arith.constant 0 : index
    %c0_5 = arith.constant 0 : index
    %c0_6 = arith.constant 0 : index
    %5 = vector.load %arg5[%c0_4, %c0_5, %c0_6] : memref<1x4x256xf32, #tpu.memory_space<vmem>>, vector<1x4x256xf32>
    %6 = vector.shape_cast %5 : vector<1x4x256xf32> to vector<4x256xf32>
    %cst = arith.constant dense<0.000000e+00> : vector<8x256xf32>
    %7 = tpu.matmul %4, %6, %cst {dimension_numbers = #tpu.dot_dimension_numbers<[1], [0], [0], [1], [0, 0, 1, 1], [], []>} : vector<8x4xf32>, vector<4x256xf32>, vector<8x256xf32> -> vector<8x256xf32>
    %8 = arith.addf %3, %7 : vector<8x256xf32>
    %c0_7 = arith.constant 0 : index
    %c0_8 = arith.constant 0 : index
    %9 = vector.load %arg8[%c0_7, %c0_8] : memref<8x256xf32, #tpu.memory_space<vmem>>, vector<8x256xf32>
    tpu.vector_store %arg8[%c0_7, %c0_8], %8 {strides = array<i32>} : memref<8x256xf32, #tpu.memory_space<vmem>>, vector<8x256xf32>,
    %c0_i32_9 = arith.constant 0 : i32
    %10 = arith.cmpi eq, %arg2, %c0_i32_9 : i32
    %11 = arith.extui %10 : i1 to i32
    %c0_i32_10 = arith.constant 0 : i32
    %12 = arith.cmpi ne, %11, %c0_i32_10 : i32
    scf.if %12 {
      %c0_11 = arith.constant 0 : index
      %c0_12 = arith.constant 0 : index
      %13 = vector.load %arg8[%c0_11, %c0_12] : memref<8x256xf32, #tpu.memory_space<vmem>>, vector<8x256xf32>
      %c0_13 = arith.constant 0 : index
      %c0_14 = arith.constant 0 : index
      %14 = vector.load %arg4[%c0_13, %c0_14] : memref<8x1xf32, #tpu.memory_space<vmem>>, vector<8x1xf32>
      %15 = vector.broadcast %14 : vector<8x1xf32> to vector<8x256xf32>
      %16 = arith.addf %13, %15 : vector<8x256xf32>
      %c0_15 = arith.constant 0 : index
      %c0_16 = arith.constant 0 : index
      %c0_17 = arith.constant 0 : index
      %17 = vector.load %arg6[%c0_15, %c0_16, %c0_17] : memref<1x8x256xf32, #tpu.memory_space<vmem>>, vector<1x8x256xf32>
      %18 = vector.shape_cast %17 : vector<1x8x256xf32> to vector<8x256xf32>
      %19 = arith.addf %16, %18 : vector<8x256xf32>
      %c0_18 = arith.constant 0 : index
      %c0_19 = arith.constant 0 : index
      %c0_20 = arith.constant 0 : index
      %20 = vector.load %arg7[%c0_18, %c0_19, %c0_20] : memref<1x8x256xf32, #tpu.memory_space<vmem>>, vector<1x8x256xf32>
      %21 = vector.shape_cast %20 : vector<1x8x256xf32> to vector<8x256xf32>
      %22 = vector.shape_cast %19 : vector<8x256xf32> to vector<1x8x256xf32>
      tpu.vector_store %arg7[%c0_18, %c0_19, %c0_20], %22 {strides = array<i32>} : memref<1x8x256xf32, #tpu.memory_space<vmem>>, vector<1x8x256xf32>,
    } else {
    }
    return
  }
  func.func @transform_0(%arg0: i32, %arg1: i32, %arg2: i32) -> (i32, i32) {
    %c0_i32 = arith.constant 0 : i32
    %c0_i32_0 = arith.constant 0 : i32
    return %c0_i32, %arg2 : i32, i32
  }
  func.func @transform_1(%arg0: i32, %arg1: i32, %arg2: i32) -> (i32, i32) {
    %c0_i32 = arith.constant 0 : i32
    %c0_i32_0 = arith.constant 0 : i32
    %c0_i32_1 = arith.constant 0 : i32
    return %c0_i32, %c0_i32_0 : i32, i32
  }
  func.func @transform_2(%arg0: i32, %arg1: i32, %arg2: i32) -> (i32, i32, i32) {
    %c0_i32 = arith.constant 0 : i32
    return %arg0, %arg2, %arg1 : i32, i32, i32
  }
  func.func @transform_3(%arg0: i32, %arg1: i32, %arg2: i32) -> (i32, i32, i32) {
    %c0_i32 = arith.constant 0 : i32
    %c0_i32_0 = arith.constant 0 : i32
    return %arg0, %c0_i32, %arg1 : i32, i32, i32
  }
  func.func @transform_4(%arg0: i32, %arg1: i32, %arg2: i32) -> (i32, i32, i32) {
    %c0_i32 = arith.constant 0 : i32
    %c0_i32_0 = arith.constant 0 : i32
    return %arg0, %c0_i32, %arg1 : i32, i32, i32
  }
}

</mosaic_0001>

<llo_original>
// kernel: tpu_custom_call.1
$region0: #{tpu_custom_call.1}
  #allocation0 [shape = 'u32[]', space=smem, size = 0x4, offset = 0x4, fixed_abs, tag = 'smem constant byte address 0x4 - core index']
  #allocation1 [shape = 'u32[144,128]{1,0:T(1,128)}', space=vmem, size = 0x12000, scoped, tag = 'internal scratch']
  #allocation2 [shape = 'f32[8,256]{1,0:T(8,128)}', space=vmem, size = 0x2000, scoped, tag = 'scratch operand']
  %s0 = inlined_call_operand.vmem [shape: f32[8,4], index: 0, kind: input, shape index: {}]
  %s1 = inlined_call_operand.vmem [shape: f32[8,1], index: 1, kind: input, shape index: {}]
  %s2 = inlined_call_operand.vmem [shape: f32[2,4,256], index: 2, kind: input, shape index: {}]
  %s3 = inlined_call_operand.hbm [shape: f32[2,8,256], index: 3, kind: input, shape index: {}]
  %s4 = inlined_call_operand.hbm [shape: f32[2,8,256], index: 4, kind: output, shape index: {}]
  %s5 = sld [smem:[#allocation0]]
  $region61: #{tpu_custom_call.1} parent=0
    _
  %s7 = ssub.s32 1, %s5
  %s8 = scalar_select 0, %s7, %s5
  $region1: #{tpu_custom_call.1} parent=0
    #allocation3 [shape = 'u8[16384]{0}', space=vmem, size = 0x4000, scoped, tag = 'input window, operand 3']
    #allocation4 [shape = 's32[2]{0}', space=sflag, size = 0x8, scoped, tag = 'scoped memory for tpu_custom_call.1']
    #allocation5 [shape = 's32[2]{0}', space=sflag, size = 0x8, scoped, tag = 'scoped memory for tpu_custom_call.1']
    #allocation6 [shape = 'u8[16384]{0}', space=vmem, size = 0x4000, scoped, tag = 'output window, operand 0']
    %9 = vsyncpa [#allocation4], 0
    %s10 = scalar_lea.sflag [#allocation4], 1
    %11 = vsyncpa %s10, 0
    %12 = vsyncpa [#allocation5], 0
    %s13 = scalar_lea.sflag [#allocation5], 1
    %14 = vsyncpa %s13, 0
    loop: start=0, step=1, limit=4
    $region2: #{tpu_custom_call.1} parent=1 // loop_pre_header
      _
    $region3: #{tpu_custom_call.1} parent=1 // loop_header
      %s16 = sphi 0, %s20
      %p17 = scmp.ge.s32.totalorder %s16, 4
      %s23 = sphi 0, %s42
      %s24 = sphi 0, %s38
      %s25 = sphi 0, %s34
      %s26 = sphi 0, %s23
      %s27 = sphi 0, %s24
      %s28 = sphi 0, %s25
      %s29 = sphi 0, %s26
      %s30 = sphi 0, %s27
      %s31 = sphi 0, %s28
      %s45 = sphi 0, %s47
      %s48 = sphi 0, %s45
      %s49 = sphi 0, %s48
      %s65 = sphi 0, %s49
      %s69 = sphi 0, %s69
      %s71 = sphi 0, %s69
      %s72 = sphi 0, %s71
      %s86 = sphi 0, %s72
      %s96 = sphi 0, %s98
      %s99 = sphi 0, %s96
      %s100 = sphi 0, %s99
      %s116 = sphi 0, %s100
      %s124 = sphi 0, %s126
      %s127 = sphi 0, %s124
      %s128 = sphi 0, %s127
      %s144 = sphi 0, %s128
      %s152 = sphi 0, %s154
      %s155 = sphi 0, %s152
      %s156 = sphi 0, %s155
      %s172 = sphi 0, %s156
    $region4: #{tpu_custom_call.1} parent=1 // loop_header_branch
      %19 = sbr.rel (%p17) target = $region8
    $region5: #{tpu_custom_call.1} parent=1 // loop_body
      %s21 = ssub.s32 %s16, 1
      %s22 = ssub.s32 %s16, 2
      %s32 = sadd.s32 1, %s25
      %p33 = scmp.ge.s32.totalorder %s32, 1
      %s34 = scalar_select %p33, 0, %s32
      %s35 = sadd.s32 1, %s24
      %s36 = scalar_select %p33, %s35, %s24
      %p37 = scmp.ge.s32.totalorder %s36, 1
      %s38 = scalar_select %p37, 0, %s36
      %s39 = sadd.s32 1, %s23
      %s40 = scalar_select %p37, %s39, %s23
      %p41 = scmp.ge.s32.totalorder %s40, 2
      %s42 = scalar_select %p41, 0, %s40
      %s43 = ssub.s32 %s25, %s34
      %p44 = scmp.eq.s32.totalorder %s43, 0
      %s46 = sadd.s32 %s45, 1
      %s47 = scalar_select %p44, %s45, %s46
      %p50 = pneg %p44
      %p51 = scmp.eq.s32.totalorder %s16, 1
      %p52 = por %p50, %p51
      %p53 = scmp.ne.s32.totalorder %s45, %s48
      %p54 = scmp.eq.s32.totalorder %s16, 0
      %p55 = por %p53, %p54
      %p56 = scmp.ne.s32.totalorder %s45, %s48
      %p57 = scmp.eq.s32.totalorder %s21, 1
      %p58 = por %p56, %p57
      %p59 = scmp.ne.s32.totalorder %s48, %s49
      %p60 = scmp.eq.s32.totalorder %s21, 0
      %p61 = por %p59, %p60
      %p62 = scmp.ne.s32.totalorder %s48, %s49
      %p63 = scmp.eq.s32.totalorder %s22, 1
      %p64 = por %p62, %p63
      %p66 = scmp.ne.s32.totalorder %s49, %s65
      %p67 = scmp.eq.s32.totalorder %s22, 0
      %p68 = por %p66, %p67
      %s70 = sadd.s32 %s69, 1
      %p73 = scmp.eq.s32.totalorder %s16, 1
      %p74 = scmp.ne.s32.totalorder %s69, %s71
      %p75 = scmp.eq.s32.totalorder %s16, 0
      %p76 = por %p74, %p75
      %p77 = scmp.ne.s32.totalorder %s69, %s71
      %p78 = scmp.eq.s32.totalorder %s21, 1
      %p79 = por %p77, %p78
      %p80 = scmp.ne.s32.totalorder %s71, %s72
      %p81 = scmp.eq.s32.totalorder %s21, 0
      %p82 = por %p80, %p81
      %p83 = scmp.ne.s32.totalorder %s71, %s72
      %p84 = scmp.eq.s32.totalorder %s22, 1
      %p85 = por %p83, %p84
      %p87 = scmp.ne.s32.totalorder %s72, %s86
      %p88 = scmp.eq.s32.totalorder %s22, 0
      %p89 = por %p87, %p88
      %s90 = ssub.s32 %s23, %s42
      %s91 = ssub.s32 %s25, %s34
      %s92 = sor.u32 %s90, %s91
      %s93 = ssub.s32 %s24, %s38
      %s94 = sor.u32 %s92, %s93
      %p95 = scmp.eq.s32.totalorder %s94, 0
      %s97 = sadd.s32 %s96, 1
      %s98 = scalar_select %p95, %s96, %s97
      %p101 = pneg %p95
      %p102 = scmp.eq.s32.totalorder %s16, 1
      %p103 = por %p101, %p102
      %p104 = scmp.ne.s32.totalorder %s96, %s99
      %p105 = scmp.eq.s32.totalorder %s16, 0
      %p106 = por %p104, %p105
      %p107 = scmp.ne.s32.totalorder %s96, %s99
      %p108 = scmp.eq.s32.totalorder %s21, 1
      %p109 = por %p107, %p108
      %p110 = scmp.ne.s32.totalorder %s99, %s100
      %p111 = scmp.eq.s32.totalorder %s21, 0
      %p112 = por %p110, %p111
      %p113 = scmp.ne.s32.totalorder %s99, %s100
      %p114 = scmp.eq.s32.totalorder %s22, 1
      %p115 = por %p113, %p114
      %p117 = scmp.ne.s32.totalorder %s100, %s116
      %p118 = scmp.eq.s32.totalorder %s22, 0
      %p119 = por %p117, %p118
      %s120 = ssub.s32 %s23, %s42
      %s121 = ssub.s32 %s24, %s38
      %s122 = sor.u32 %s120, %s121
      %p123 = scmp.eq.s32.totalorder %s122, 0
      %s125 = sadd.s32 %s124, 1
      %s126 = scalar_select %p123, %s124, %s125
      %p129 = pneg %p123
      %p130 = scmp.eq.s32.totalorder %s16, 1
      %p131 = por %p129, %p130
      %p132 = scmp.ne.s32.totalorder %s124, %s127
      %p133 = scmp.eq.s32.totalorder %s16, 0
      %p134 = por %p132, %p133
      %p135 = scmp.ne.s32.totalorder %s124, %s127
      %p136 = scmp.eq.s32.totalorder %s21, 1
      %p137 = por %p135, %p136
      %p138 = scmp.ne.s32.totalorder %s127, %s128
      %p139 = scmp.eq.s32.totalorder %s21, 0
      %p140 = por %p138, %p139
      %p141 = scmp.ne.s32.totalorder %s127, %s128
      %p142 = scmp.eq.s32.totalorder %s22, 1
      %p143 = por %p141, %p142
      %p145 = scmp.ne.s32.totalorder %s128, %s144
      %p146 = scmp.eq.s32.totalorder %s22, 0
      %p147 = por %p145, %p146
      %s148 = ssub.s32 %s23, %s42
      %s149 = ssub.s32 %s24, %s38
      %s150 = sor.u32 %s148, %s149
      %p151 = scmp.eq.s32.totalorder %s150, 0
      %s153 = sadd.s32 %s152, 1
      %s154 = scalar_select %p151, %s152, %s153
      %p157 = pneg %p151
      %p158 = scmp.eq.s32.totalorder %s16, 1
      %p159 = por %p157, %p158
      %p160 = scmp.ne.s32.totalorder %s152, %s155
      %p161 = scmp.eq.s32.totalorder %s16, 0
      %p162 = por %p160, %p161
      %p163 = scmp.ne.s32.totalorder %s152, %s155
      %p164 = scmp.eq.s32.totalorder %s21, 1
      %p165 = por %p163, %p164
      %p166 = scmp.ne.s32.totalorder %s155, %s156
      %p167 = scmp.eq.s32.totalorder %s21, 0
      %p168 = por %p166, %p167
      %p169 = scmp.ne.s32.totalorder %s155, %s156
      %p170 = scmp.eq.s32.totalorder %s22, 1
      %p171 = por %p169, %p170
      %p173 = scmp.ne.s32.totalorder %s156, %s172
      %p174 = scmp.eq.s32.totalorder %s22, 0
      %p175 = por %p173, %p174
      %p176 = scmp.le.s32.totalorder 1, %s16
      %p177 = scmp.lt.s32.totalorder %s16, 3
      %p178 = pnand %p176, %p177
      %p179 = pneg %p178
      // Predicated region
      $region9: #{tpu_custom_call.1} parent=5 // pred_check
        _
      $region10: #{tpu_custom_call.1} parent=5 // pred_check_branch
        %181 = sbr.rel (%p178) target = $region12
      $region11: #{tpu_custom_call.1} parent=5 // pred_region
        %s182 = ssub.s32 %s16, 1
        // Predicated region
        $region13: #{tpu_custom_call.1} parent=11 // pred_check
          %p183 = pneg %p61
        $region14: #{tpu_custom_call.1} parent=11 // pred_check_branch
          %185 = sbr.rel (%p183) target = $region16
        $region15: #{tpu_custom_call.1} parent=11 // pred_region
          %p186 = scmp.lt.s32.totalorder %s28, 0
          %s187 = scalar_select %p186, %s28, 0
          %s188 = smul.addr %s187, 8
          %s189 = scalar_lea.vmem %s0, %s188
        $region16: #{tpu_custom_call.1} parent=11 // pred_fallthru
          _
        // Predicated region
        $region17: #{tpu_custom_call.1} parent=11 // pred_check
          %p190 = pneg %p82
        $region18: #{tpu_custom_call.1} parent=11 // pred_check_branch
          %192 = sbr.rel (%p190) target = $region20
        $region19: #{tpu_custom_call.1} parent=11 // pred_region
          _
        $region20: #{tpu_custom_call.1} parent=11 // pred_fallthru
          _
      $region12: #{tpu_custom_call.1} parent=5 // pred_fallthru
        _
      %p193 = scmp.lt.s32.totalorder %s16, 2
      // Predicated region
      $region21: #{tpu_custom_call.1} parent=5 // pred_check
        %p194 = pneg %p193
      $region22: #{tpu_custom_call.1} parent=5 // pred_check_branch
        %196 = sbr.rel (%p194) target = $region24
      $region23: #{tpu_custom_call.1} parent=5 // pred_region
        // Predicated region
        $region25: #{tpu_custom_call.1} parent=23 // pred_check
          %p197 = pneg %p106
        $region26: #{tpu_custom_call.1} parent=23 // pred_check_branch
          %199 = sbr.rel (%p197) target = $region28
        $region27: #{tpu_custom_call.1} parent=23 // pred_region
          %s200 = smul.u32 2, %s24
          %p201 = scmp.lt.s32.totalorder %s23, 1
          %s202 = scalar_select %p201, %s23, 1
          %p203 = scmp.lt.s32.totalorder %s25, 0
          %s204 = scalar_select %p203, %s25, 0
          %p205 = scmp.lt.s32.totalorder %s200, 1
          %s206 = scalar_select %p205, %s200, 1
          %s207 = smul.addr %s204, 2
          %s208 = sadd.s32 %s206, %s207
          %s209 = smul.addr %s202, 2
          %s210 = sadd.s32 %s208, %s209
          %s211 = smul.addr %s210, 4
          %s212 = scalar_lea.vmem %s2, %s211
          %s213 = smul.u32 2, %s24
        $region28: #{tpu_custom_call.1} parent=23 // pred_fallthru
          _
        // Predicated region
        $region29: #{tpu_custom_call.1} parent=23 // pred_check
          %p214 = pneg %p134
        $region30: #{tpu_custom_call.1} parent=23 // pred_check_branch
          %216 = sbr.rel (%p214) target = $region32
        $region31: #{tpu_custom_call.1} parent=23 // pred_region
          %s217 = sand.u32 %s124, 1
          %s218 = scalar_lea.sflag [#allocation4], %s217
          %s219 = sand.u32 %s124, 1
          %s220 = smul.addr %s219, 16
          %s221 = scalar_lea.vmem [#allocation3], %s220
          %s222 = smul.u32 2, %s24
          %s224 = ssub.s32 256, 256
          %225 = vsyncadd %s218, %s224
          %s226 = smul.addr %s23, 2
          %s227 = sadd.s32 %s222, %s226
          %s228 = smul.addr %s227, 128
          %s229 = scalar_lea.hbm %s3, %s228
          %s231 = sshll.u32 %s221, 4
          %s232 = int_to_ptr.vmem [resolvable:$true] %s231
          %234 = dma.hbm_to_vmem [thread:$0]  %s229, 256, %s232, %s218
        $region32: #{tpu_custom_call.1} parent=23 // pred_fallthru
          _
      $region24: #{tpu_custom_call.1} parent=5 // pred_fallthru
        _
      %p235 = scmp.le.s32.totalorder 1, %s16
      %p236 = scmp.lt.s32.totalorder %s16, 3
      %p237 = pnand %p235, %p236
      %p238 = pneg %p237
      // Predicated region
      $region33: #{tpu_custom_call.1} parent=5 // pred_check
        _
      $region34: #{tpu_custom_call.1} parent=5 // pred_check_branch
        %240 = sbr.rel (%p237) target = $region36
      $region35: #{tpu_custom_call.1} parent=5 // pred_region
        %s241 = ssub.s32 %s16, 1
        %s242 = sand.u32 %s127, 1
        %s243 = scalar_lea.sflag [#allocation4], %s242
        %s244 = sand.u32 %s127, 1
        %s245 = smul.addr %s244, 16
        %s246 = scalar_lea.vmem [#allocation3], %s245
        // Predicated region
        $region37: #{tpu_custom_call.1} parent=35 // pred_check
          %p247 = pneg %p140
        $region38: #{tpu_custom_call.1} parent=35 // pred_check_branch
          %249 = sbr.rel (%p247) target = $region40
        $region39: #{tpu_custom_call.1} parent=35 // pred_region
          %250 = dma.done %s243, 256
        $region40: #{tpu_custom_call.1} parent=35 // pred_fallthru
          _
        %p251 = scmp.lt.s32.totalorder %s28, 0
        %s252 = scalar_select %p251, %s28, 0
        %s253 = smul.addr %s252, 8
        %s254 = scalar_lea.vmem %s0, %s253
        %p255 = pneg %p61
        %p256 = pneg %p58
        %p257 = pneg %p82
        %p258 = pneg %p79
        %s259 = smul.u32 2, %s27
        %p260 = scmp.lt.s32.totalorder %s26, 1
        %s261 = scalar_select %p260, %s26, 1
        %p262 = scmp.lt.s32.totalorder %s28, 0
        %s263 = scalar_select %p262, %s28, 0
        %p264 = scmp.lt.s32.totalorder %s259, 1
        %s265 = scalar_select %p264, %s259, 1
        %s266 = smul.addr %s263, 2
        %s267 = sadd.s32 %s265, %s266
        %s268 = smul.addr %s261, 2
        %s269 = sadd.s32 %s267, %s268
        %s270 = smul.addr %s269, 4
        %s271 = scalar_lea.vmem %s2, %s270
        %p272 = pneg %p112
        %p273 = pneg %p109
        %s274 = sand.u32 %s127, 1
        %s275 = scalar_lea.sflag [#allocation4], %s274
        %s276 = sand.u32 %s127, 1
        %s277 = smul.addr %s276, 16
        %s278 = scalar_lea.vmem [#allocation3], %s277
        %p279 = pneg %p140
        %p280 = pneg %p137
        %p281 = pneg %p168
        %p282 = pneg %p165
        %s283 = sand.u32 %s155, 1
        %s284 = scalar_lea.sflag [#allocation5], %s283
        %s285 = sand.u32 %s155, 1
        %s286 = smul.addr %s285, 16
        %s287 = scalar_lea.vmem [#allocation6], %s286
        %p288 = scmp.lt.s32.totalorder %s28, 0
        %s289 = scalar_select %p288, %s28, 0
        %s290 = smul.addr %s289, 8
        %s291 = scalar_lea.vmem %s0, %s290
        %s292 = smul.u32 2, %s27
        %p293 = scmp.lt.s32.totalorder %s26, 1
        %s294 = scalar_select %p293, %s26, 1
        %p295 = scmp.lt.s32.totalorder %s28, 0
        %s296 = scalar_select %p295, %s28, 0
        %p297 = scmp.lt.s32.totalorder %s292, 1
        %s298 = scalar_select %p297, %s292, 1
        %s299 = smul.addr %s296, 2
        %s300 = sadd.s32 %s298, %s299
        %s301 = smul.addr %s294, 2
        %s302 = sadd.s32 %s300, %s301
        %s303 = smul.addr %s302, 4
        %s304 = scalar_lea.vmem %s2, %s303
        %s305 = smul.u32 2, %s27
        %s306 = smul.u32 2, %s27
        %s307 = smul.u32 2, %s27
        %p308 = scmp.eq.s32.totalorder %s28, 0
        // Predicated region
        $region41: #{tpu_custom_call.1} parent=35 // pred_check
          %p309 = pneg %p308
        $region42: #{tpu_custom_call.1} parent=35 // pred_check_branch
          %311 = sbr.rel (%p309) target = $region44
        $region43: #{tpu_custom_call.1} parent=35 // pred_region
          %312 = vst [vmem:[#allocation2] sm:$0xff] 0.0
          %313 = vst [vmem:[#allocation2 + $0x8] sm:$0xff] 0.0
        $region44: #{tpu_custom_call.1} parent=35 // pred_fallthru
          _
        %v314 = vld [vmem:[#allocation2] sm:$0xff]
        %v315 = vld [vmem:[#allocation2 + $0x8] sm:$0xff]
        %v316 = vld [vmem:[%s291] sm:$0xff]
        %v317 = vld [vmem:[%s304] sm:$0xff]
        %v319 = vcombine.high %v317, %v317
        %vm320 = vcmask 31744
        %v322 = vsel %vm320, %v316, 0
        %vm324 = vcmask 1043456
        %v325 = vsel %vm324, %v317, 0
        %v327 = vsel %vm324, %v319, 0
        %329 = vmatprep.subr.mxu0 0.0
        %330 = vmatpush1.msra.mxu0 0.0
        %331 = vmatprep.subr.mxu0 0.0
        %332 = vmatpush1.msra.mxu0 0.0
        %333 = vmatprep.subr.mxu0 0.0
        %334 = vmatpush1.msra.mxu0 0.0
        %335 = vmatprep.subr.mxu0 0.0
        %336 = vmatpush1.msra.mxu0 0.0
        %337 = vmatprep.subr.mxu0 0.0
        %338 = vmatpush1.msra.mxu0 0.0
        %339 = vmatprep.subr.mxu0 0.0
        %340 = vmatpush1.msra.mxu0 0.0
        %341 = vmatprep.subr.mxu0 0.0
        %342 = vmatpush1.msra.mxu0 0.0
        %343 = vmatprep.subr.mxu0 0.0
        %344 = vmatpush1.msra.mxu0 0.0
        %345 = vmatprep.subr.mxu0 0.0
        %346 = vmatpush1.msra.mxu0 0.0
        %347 = vmatprep.subr.mxu0 0.0
        %348 = vmatpush1.msra.mxu0 0.0
        %349 = vmatprep.subr.mxu0 0.0
        %350 = vmatpush1.msra.mxu0 0.0
        %351 = vmatprep.subr.mxu0 0.0
        %352 = vmatpush1.msra.mxu0 0.0
        %353 = vmatprep.subr.mxu0 0.0
        %354 = vmatpush1.msra.mxu0 0.0
        %355 = vmatprep.subr.mxu0 0.0
        %356 = vmatpush1.msra.mxu0 0.0
        %357 = vmatprep.subr.mxu0 0.0
        %358 = vmatpush1.msra.mxu0 0.0
        %359 = vmatprep.subr.mxu0 %v327
        %360 = vmatpush1.msra.mxu0 %v325
        %361 = vmatprep.subr.mxu0 0.0
        %362 = vmatpush2.msra.mxu0 0.0
        %363 = vmatprep.subr.mxu0 0.0
        %364 = vmatpush2.msra.mxu0 0.0
        %365 = vmatprep.subr.mxu0 0.0
        %366 = vmatpush2.msra.mxu0 0.0
        %367 = vmatprep.subr.mxu0 0.0
        %368 = vmatpush2.msra.mxu0 0.0
        %369 = vmatprep.subr.mxu0 0.0
        %370 = vmatpush2.msra.mxu0 0.0
        %371 = vmatprep.subr.mxu0 0.0
        %372 = vmatpush2.msra.mxu0 0.0
        %373 = vmatprep.subr.mxu0 0.0
        %374 = vmatpush2.msra.mxu0 0.0
        %375 = vmatprep.subr.mxu0 0.0
        %376 = vmatpush2.msra.mxu0 0.0
        %377 = vmatprep.subr.mxu0 0.0
        %378 = vmatpush2.msra.mxu0 0.0
        %379 = vmatprep.subr.mxu0 0.0
        %380 = vmatpush2.msra.mxu0 0.0
        %381 = vmatprep.subr.mxu0 0.0
        %382 = vmatpush2.msra.mxu0 0.0
        %383 = vmatprep.subr.mxu0 0.0
        %384 = vmatpush2.msra.mxu0 0.0
        %385 = vmatprep.subr.mxu0 0.0
        %386 = vmatpush2.msra.mxu0 0.0
        %387 = vmatprep.subr.mxu0 0.0
        %388 = vmatpush2.msra.mxu0 0.0
        %389 = vmatprep.subr.mxu0 0.0
        %390 = vmatpush2.msra.mxu0 0.0
        %391 = vmatprep.subr.mxu0 0.0
        %392 = vmatpush2.msra.mxu0 0.0
        %393 = vmatprep.mubr.f32.mxu0 0.0
        %394 = vmatmul.mubr.f32.gmra.mxu0 %v322
        %v395 = vpop.f32.mrf.mxu0
        %v396 = vadd.f32 0.0, %v395
        %v397 = vpop.f32.mrf.mxu0
        %v398 = vadd.f32 0.0, %v397
        %399 = vdwg.mxu0
        %v400 = vadd.f32 %v314, %v396
        %v401 = vadd.f32 %v315, %v398
        %402 = vst [vmem:[#allocation2] sm:$0xff] %v400
        %403 = vst [vmem:[#allocation2 + $0x8] sm:$0xff] %v401
        // Predicated region
        $region45: #{tpu_custom_call.1} parent=35 // pred_check
          %p404 = pneg %p308
        $region46: #{tpu_custom_call.1} parent=35 // pred_check_branch
          %406 = sbr.rel (%p404) target = $region48
        $region47: #{tpu_custom_call.1} parent=35 // pred_region
          %v407 = vld [vmem:[#allocation2] sm:$0xff]
          %v408 = vld [vmem:[#allocation2 + $0x8] sm:$0xff]
          %v409 = vld [vmem:[%s1] sm:$0xff]
          %411 = vset.pattern.permute.xlu0 0
          %412 = vperm.xlu0 %411, %v409
          %v413 = vpop.permute.xlu0 %412
          %v415 = vadd.f32 %v407, %v413
          %v416 = vadd.f32 %v408, %v413
          %v417 = vld [vmem:[%s246] sm:$0xff]
          %v418 = vld [vmem:[%s246 + $0x8] sm:$0xff]
          %v419 = vadd.f32 %v415, %v417
          %v420 = vadd.f32 %v416, %v418
          %421 = vst [vmem:[%s287] sm:$0xff] %v419
          %422 = vst [vmem:[%s287 + $0x8] sm:$0xff] %v420
        $region48: #{tpu_custom_call.1} parent=35 // pred_fallthru
          _
        %s423 = sand.u32 %s155, 1
        %s424 = scalar_lea.sflag [#allocation5], %s423
        %s425 = sand.u32 %s155, 1
        %s426 = smul.addr %s425, 16
        %s427 = scalar_lea.vmem [#allocation6], %s426
        // Predicated region
        $region49: #{tpu_custom_call.1} parent=35 // pred_check
          %p428 = pneg %p165
        $region50: #{tpu_custom_call.1} parent=35 // pred_check_branch
          %430 = sbr.rel (%p428) target = $region52
        $region51: #{tpu_custom_call.1} parent=35 // pred_region
          %s431 = smul.u32 2, %s27
          %s433 = ssub.s32 256, 256
          %434 = vsyncadd %s424, %s433
          %s435 = smul.addr %s26, 2
          %s436 = sadd.s32 %s431, %s435
          %s437 = smul.addr %s436, 128
          %s438 = scalar_lea.hbm %s4, %s437
          %s440 = sshll.u32 %s427, 4
          %s441 = int_to_ptr.vmem [resolvable:$true] %s440
          %443 = dma.vmem_to_hbm [thread:$0]  %s441, 256, %s438, %s424
        $region52: #{tpu_custom_call.1} parent=35 // pred_fallthru
          _
      $region36: #{tpu_custom_call.1} parent=5 // pred_fallthru
        _
      %p444 = scmp.le.s32.totalorder 2, %s16
      // Predicated region
      $region53: #{tpu_custom_call.1} parent=5 // pred_check
        %p445 = pneg %p444
      $region54: #{tpu_custom_call.1} parent=5 // pred_check_branch
        %447 = sbr.rel (%p445) target = $region56
      $region55: #{tpu_custom_call.1} parent=5 // pred_region
        %s448 = ssub.s32 %s16, 2
        // Predicated region
        $region57: #{tpu_custom_call.1} parent=55 // pred_check
          %p449 = pneg %p171
        $region58: #{tpu_custom_call.1} parent=55 // pred_check_branch
          %451 = sbr.rel (%p449) target = $region60
        $region59: #{tpu_custom_call.1} parent=55 // pred_region
          %s452 = sand.u32 %s156, 1
          %s453 = scalar_lea.sflag [#allocation5], %s452
          %s454 = sand.u32 %s156, 1
          %s455 = smul.addr %s454, 16
          %s456 = scalar_lea.vmem [#allocation6], %s455
          %457 = dma.done %s453, 256
        $region60: #{tpu_custom_call.1} parent=55 // pred_fallthru
          _
      $region56: #{tpu_custom_call.1} parent=5 // pred_fallthru
        _
    $region6: #{tpu_custom_call.1} parent=1 // loop_footer
      %s20 = sadd.s32 1, %s16
    $region7: #{tpu_custom_call.1} parent=1 // loop_footer_branch
      %15 = sbr.rel target = $region3
    $region8: #{tpu_custom_call.1} parent=1 // loop_exit
      _
    %458 = vsyncpa [#allocation4], 1
    %s459 = scalar_lea.sflag [#allocation4], 1
    %460 = vsyncpa %s459, 1
    %461 = vsyncpa [#allocation5], 1
    %s462 = scalar_lea.sflag [#allocation5], 1
    %463 = vsyncpa %s462, 1

</llo_original>
